<compile_context>
chip_gen: v7x
topology: tpu7x:2x2x1
jax: 0.10.0
libtpu: 0.0.40
codegen_flags: <defaults>
</compile_context>

<pallas_src>
import functools

import jax
import jax.numpy as jnp
from jax.experimental import pallas as pl
from jax.experimental.pallas import tpu as pltpu


def _denoiser_kernel(x_ref, t_ref, sb_ref, ob_ref, fp_ref, wbig_ref, wout_ref,
                     o_ref, *, d_in, compute_dtype):
    # x_ref : (d_in, L)        t_ref : (1, L)
    # sb_ref: (d_in, 1)        ob_ref: (d_out, 1)
    # fp_ref: (d_t, 2) [freqs | phase]
    # wbig_ref: (d_in + d_out, d_c) = [W_scale ; W_out @ W_shift]
    # wout_ref: (d_out, d_in)
    # o_ref : (d_out, L)
    freqs = fp_ref[:, 0:1]                                    # (d_t, 1)
    phase = fp_ref[:, 1:2]                                    # (d_t, 1)

    # Sinusoidal time embedding with the even/odd parity folded into a phase:
    # even rows sin(w*t), odd rows cos(w*t) == sin(w*t + pi/2). One EUP op/elem,
    # computed in f32 (v5e's VPU/EUP have no bf16 path anyway).
    tt = t_ref[...].astype(jnp.float32)                       # (1, L)
    temb = jnp.sin(freqs * tt + phase)                        # (d_t, L)

    # One wide MXU push gives both the FiLM scale rows and the (already W_out-
    # projected) shift contribution for the whole lane slab.
    sm = jnp.dot(wbig_ref[...], temb.astype(compute_dtype),
                 preferred_element_type=jnp.float32)          # (d_in + d_out, L)
    scale_t = sm[:d_in]                                       # (d_in, L)
    oshift_t = sm[d_in:]                                      # (d_out, L)

    x = x_ref[...].astype(jnp.float32)                        # (d_in, L)
    # sb = 1 + W_scale @ cemb (per batch element, broadcast over lanes).
    h = x * (scale_t + sb_ref[...])                           # (d_in, L)

    out = jnp.dot(wout_ref[...], h.astype(compute_dtype),
                  preferred_element_type=jnp.float32)         # (d_out, L)
    # ob = b_out + W_out @ W_shift @ cemb (per batch element).
    o_ref[...] = (out + oshift_t + ob_ref[...]).astype(o_ref.dtype)


def _pick_lane_chunk(total_lanes, bytes_per_lane, budget, min_chunks=1):
    """Largest multiple-of-128 divisor of total_lanes whose streamed bytes fit
    `budget`, leaving at least `min_chunks` grid steps along the lane axis."""
    if total_lanes % 128 != 0:
        return total_lanes            # full-extent block (allowed by the (8,128) rule)
    best = 128
    l = 128
    while l <= total_lanes:
        if (total_lanes % l == 0
                and l * bytes_per_lane <= budget
                and total_lanes // l >= min_chunks):
            best = l
        l += 128
    return best


def denoiser_forward(x, t, label, params, *, io_dtype=None,
                     compute_dtype=jnp.float32, lane_chunk=None):
    """x: [B, T, d_in, H, W]  t: [B, T, 1, H, W]  label: [B] int32
       -> [B, T, d_out, H, W] (dtype = io_dtype if given, else x.dtype)."""
    B, T, d_in, H, W = x.shape
    P = H * W
    Ltot = T * P                       # lanes per batch element

    class_table = params["class_table"]        # (num_classes, d_c)
    freqs = params["freqs"]                    # (d_t, 1)
    w_scale = params["w_scale"]                # (d_in, d_c)
    w_shift = params["w_shift"]                # (d_in, d_c)
    w_out = params["w_out"]                    # (d_out, d_in)
    b_out = params["b_out"]                    # (d_out, 1)
    d_c = class_table.shape[1]
    d_t = freqs.shape[0]
    d_out = w_out.shape[0]

    # The base class fixes d_t == d_c (time embedding is added to the class emb).
    assert d_t == d_c, "Denoiser requires d_t == d_c."

    io_dt = io_dtype if io_dtype is not None else x.dtype
    io_bytes = jnp.dtype(io_dt).itemsize

    # --- wrapper-side precomputation (all tiny: O(d^2) / O(B*d)) ---
    # cos(a) = sin(a + pi/2): per-row phase column; merged with freqs into one
    # (d_t, 2) resident constant.
    k = jnp.arange(d_t)
    phase = jnp.where((k % 2) == 0, 0.0, jnp.pi / 2.0).astype(jnp.float32)[:, None]
    fp = jnp.concatenate([freqs.astype(jnp.float32), phase], axis=1)      # (d_t, 2)

    # Fused projection weight: [W_scale ; W_out @ W_shift]; the shift term is
    # added to the output after the second dot (exact algebra).
    w_os = w_out @ w_shift                                                # (d_out, d_c)
    w_big = jnp.concatenate([w_scale, w_os], axis=0).astype(compute_dtype)
    w_out_c = w_out.astype(compute_dtype)

    # Class-embedding contribution folded into per-batch bias vectors:
    #   scale_bias = 1 + W_scale @ cemb              (multiplies x)
    #   out_bias   = b_out + W_out @ W_shift @ cemb  (pure additive output bias)
    cemb = class_table[label]                                             # (B, d_c)
    scale_bias = (1.0 + cemb @ w_scale.T).astype(jnp.float32)[..., None]  # (B, d_in, 1)
    out_bias = (b_out[:, 0][None, :] + cemb @ w_os.T).astype(jnp.float32)[..., None]

    # Lane-slab relayout: (B, d_in, T*H*W) / (B, 1, T*H*W). One wide matmul per
    # grid step instead of per-frame K=8 pushes.  Streamed x/out use io_dt.
    x_slab = jnp.transpose(x, (0, 2, 1, 3, 4)).reshape(B, d_in, Ltot).astype(io_dt)
    t_slab = t.reshape(B, 1, Ltot).astype(jnp.float32)   # t stays f32 for sin precision

    # Generation-aware block budget / VMEM limit (v5e/v6e: 128 MiB, v7x: 64 MiB).
    try:
        vmem_cap = int(pltpu.get_tpu_info().vmem_capacity_bytes)
    except Exception:
        vmem_cap = 64 << 20            # conservative (v7x per-TensorCore)
    bytes_per_lane = d_in * io_bytes + 4 + d_out * io_bytes   # x + t(f32) + out
    budget = vmem_cap // 16
    min_chunks = 2 if (B == 1 and Ltot >= 256) else 1
    L = lane_chunk or _pick_lane_chunk(Ltot, bytes_per_lane, budget, min_chunks)
    assert Ltot % L == 0

    streamed = L * bytes_per_lane
    need = 2 * streamed + (2 << 20)    # double-buffered streamed blocks + headroom
    vmem_limit = int(min(max(need, 8 << 20), min(vmem_cap // 2, 64 << 20)))

    kernel = functools.partial(_denoiser_kernel, d_in=d_in,
                               compute_dtype=compute_dtype)

    # NOTE: on v7x, pltpu.CORE_PARALLEL on the grid can split work across the
    # two TensorCores; plain "parallel" is kept here for portability.
    out_slab = pl.pallas_call(
        kernel,
        out_shape=jax.ShapeDtypeStruct((B, d_out, Ltot), io_dt),
        grid_spec=pltpu.PrefetchScalarGridSpec(
            num_scalar_prefetch=0,
            grid=(B, Ltot // L),
            in_specs=[
                pl.BlockSpec((None, d_in, L), lambda b, c: (b, 0, c)),    # x   (streamed)
                pl.BlockSpec((None, 1, L), lambda b, c: (b, 0, c)),       # t   (streamed)
                pl.BlockSpec((None, d_in, 1), lambda b, c: (b, 0, 0)),    # scale_bias
                pl.BlockSpec((None, d_out, 1), lambda b, c: (b, 0, 0)),   # out_bias
                pl.BlockSpec((d_t, 2), lambda b, c: (0, 0)),              # freqs|phase
                pl.BlockSpec((d_in + d_out, d_c), lambda b, c: (0, 0)),   # [W_scale; W_out@W_shift]
                pl.BlockSpec((d_out, d_in), lambda b, c: (0, 0)),         # W_out
            ],
            out_specs=pl.BlockSpec((None, d_out, L), lambda b, c: (b, 0, c)),
        ),
        compiler_params=pltpu.CompilerParams(
            dimension_semantics=("parallel", "parallel"),
            vmem_limit_bytes=vmem_limit,
        ),
    )(x_slab, t_slab, scale_bias, out_bias, fp, w_big, w_out_c)

    out = out_slab.reshape(B, d_out, T, H, W)
    return jnp.transpose(out, (0, 2, 1, 3, 4))                # (B, T, d_out, H, W)


def denoiser_reference(x, t, label, params):
    """Pure-JAX reference with the original (unfolded) semantics, for validation."""
    freqs = params["freqs"][:, 0]                                   # (d_t,)
    d_t = freqs.shape[0]
    arg = t * freqs[None, None, :, None, None]                      # (B, T, d_t, H, W)
    k = jnp.arange(d_t)
    temb = jnp.where((k % 2 == 0)[None, None, :, None, None], jnp.sin(arg), jnp.cos(arg))
    cemb = params["class_table"][label][:, None, :, None, None]     # (B, 1, d_c, 1, 1)
    cond = temb + cemb                                              # (B, T, d_c, H, W)
    scale = jnp.einsum("ic,btchw->btihw", params["w_scale"], cond)
    shift = jnp.einsum("ic,btchw->btihw", params["w_shift"], cond)
    h = x * (1.0 + scale) + shift
    out = jnp.einsum("oi,btihw->btohw", params["w_out"], h) \
        + params["b_out"][:, 0][None, None, :, None, None]
    return out


def make_params(key, d_in, d_out, d_c, num_classes):
    ks = jax.random.split(key, 5)
    d_t = d_c
    half = jnp.arange(d_t) // 2
    freqs = jnp.exp(-jnp.log(10000.0) * (2.0 * half) / d_t).astype(jnp.float32)[:, None]
    return {
        "class_table": jax.random.normal(ks[0], (num_classes, d_c), jnp.float32) * 0.5,
        "freqs": freqs,
        "w_scale": jax.random.normal(ks[1], (d_in, d_c), jnp.float32) * 0.1,
        "w_shift": jax.random.normal(ks[2], (d_in, d_c), jnp.float32) * 0.1,
        "w_out": jax.random.normal(ks[3], (d_out, d_in), jnp.float32) * 0.2,
        "b_out": jax.random.normal(ks[4], (d_out, 1), jnp.float32) * 0.01,
    }


if __name__ == "__main__":
    B, T, d_in, d_out, H, W = 2, 2, 8, 8, 16, 16
    d_c, num_classes = 8, 10

    key = jax.random.PRNGKey(0)
    kx, kt, kl, kp = jax.random.split(key, 4)
    x = jax.random.normal(kx, (B, T, d_in, H, W), jnp.float32)
    t = jax.random.uniform(kt, (B, T, 1, H, W), jnp.float32, 0.0, 1.0)
    label = jax.random.randint(kl, (B,), 0, num_classes)
    params = make_params(kp, d_in, d_out, d_c, num_classes)

    ref = denoiser_reference(x, t, label, params)

    # f32 path: algebraic refactors are exact -> tight tolerance.
    out = denoiser_forward(x, t, label, params)
    jax.block_until_ready(out)
    assert out.shape == (B, T, d_out, H, W)
    assert jnp.allclose(out, ref, atol=5e-4, rtol=5e-4)

    # bf16 streamed-I/O path (bandwidth-optimized configuration), validated with
    # a tolerance appropriate for bf16 rounding of x, weights and the output.
    out_bf16 = denoiser_forward(x, t, label, params,
                                io_dtype=jnp.bfloat16, compute_dtype=jnp.bfloat16)
    jax.block_until_ready(out_bf16)
    assert out_bf16.dtype == jnp.bfloat16
    assert jnp.allclose(out_bf16.astype(jnp.float32), ref, atol=1e-1, rtol=5e-2)

    print("KERNEL_OK")
</pallas_src>

<mosaic_0001>
module attributes {stable_mosaic.version = 11 : i64} {
  func.func @_denoiser_kernel(%arg0: i32, %arg1: i32, %arg2: memref<1x8x512xf32, #tpu.memory_space<vmem>>, %arg3: memref<1x1x512xf32, #tpu.memory_space<vmem>>, %arg4: memref<1x8x1xf32, #tpu.memory_space<vmem>>, %arg5: memref<1x8x1xf32, #tpu.memory_space<vmem>>, %arg6: memref<8x2xf32, #tpu.memory_space<vmem>>, %arg7: memref<16x8xf32, #tpu.memory_space<vmem>>, %arg8: memref<8x8xf32, #tpu.memory_space<vmem>>, %arg9: memref<1x8x512xf32, #tpu.memory_space<vmem>>) attributes {dimension_semantics = [#tpu.dimension_semantics<parallel>, #tpu.dimension_semantics<parallel>], iteration_bounds = array<i64: 2, 1>, scalar_prefetch = 0 : i64, scratch_operands = 0 : i64, tpu.core_type = #tpu.core_type<tc>, window_params = [{transform_indices = @transform_0, window_bounds = array<i64: 1, 8, 512>}, {transform_indices = @transform_1, window_bounds = array<i64: 1, 1, 512>}, {transform_indices = @transform_2, window_bounds = array<i64: 1, 8, 1>}, {transform_indices = @transform_3, window_bounds = array<i64: 1, 8, 1>}, {pipeline_mode = #tpu.pipeline_mode<synchronous>, transform_indices = @transform_4, window_bounds = array<i64: 8, 2>}, {pipeline_mode = #tpu.pipeline_mode<synchronous>, transform_indices = @transform_5, window_bounds = array<i64: 16, 8>}, {pipeline_mode = #tpu.pipeline_mode<synchronous>, transform_indices = @transform_6, window_bounds = array<i64: 8, 8>}, {transform_indices = @transform_7, window_bounds = array<i64: 1, 8, 512>}]} {
    %c0 = arith.constant 0 : index
    %c0_0 = arith.constant 0 : index
    %0 = vector.load %arg6[%c0, %c0_0] : memref<8x2xf32, #tpu.memory_space<vmem>>, vector<8x1xf32>
    %c0_1 = arith.constant 0 : index
    %c1 = arith.constant 1 : index
    %1 = vector.load %arg6[%c0_1, %c1] : memref<8x2xf32, #tpu.memory_space<vmem>>, vector<8x1xf32>
    %c0_2 = arith.constant 0 : index
    %c0_3 = arith.constant 0 : index
    %c0_4 = arith.constant 0 : index
    %2 = vector.load %arg3[%c0_2, %c0_3, %c0_4] : memref<1x1x512xf32, #tpu.memory_space<vmem>>, vector<1x1x512xf32>
    %3 = vector.shape_cast %2 : vector<1x1x512xf32> to vector<1x512xf32>
    %4 = vector.broadcast %0 : vector<8x1xf32> to vector<8x512xf32>
    %5 = vector.broadcast %3 : vector<1x512xf32> to vector<8x512xf32>
    %6 = arith.mulf %4, %5 : vector<8x512xf32>
    %7 = vector.broadcast %1 : vector<8x1xf32> to vector<8x512xf32>
    %8 = arith.addf %6, %7 : vector<8x512xf32>
    %9 = math.sin %8 : vector<8x512xf32>
    %c0_5 = arith.constant 0 : index
    %c0_6 = arith.constant 0 : index
    %10 = vector.load %arg7[%c0_5, %c0_6] : memref<16x8xf32, #tpu.memory_space<vmem>>, vector<16x8xf32>
    %cst = arith.constant dense<0.000000e+00> : vector<16x512xf32>
    %11 = tpu.matmul %10, %9, %cst {dimension_numbers = #tpu.dot_dimension_numbers<[1], [0], [0], [1], [0, 0, 1, 1], [], []>} : vector<16x8xf32>, vector<8x512xf32>, vector<16x512xf32> -> vector<16x512xf32>
    %12 = vector.extract_strided_slice %11 {offsets = [0, 0], sizes = [8, 512], strides = [1, 1]} : vector<16x512xf32> to vector<8x512xf32>
    %13 = vector.extract_strided_slice %11 {offsets = [8, 0], sizes = [8, 512], strides = [1, 1]} : vector<16x512xf32> to vector<8x512xf32>
    %c0_7 = arith.constant 0 : index
    %c0_8 = arith.constant 0 : index
    %c0_9 = arith.constant 0 : index
    %14 = vector.load %arg2[%c0_7, %c0_8, %c0_9] : memref<1x8x512xf32, #tpu.memory_space<vmem>>, vector<1x8x512xf32>
    %15 = vector.shape_cast %14 : vector<1x8x512xf32> to vector<8x512xf32>
    %c0_10 = arith.constant 0 : index
    %c0_11 = arith.constant 0 : index
    %c0_12 = arith.constant 0 : index
    %16 = vector.load %arg4[%c0_10, %c0_11, %c0_12] : memref<1x8x1xf32, #tpu.memory_space<vmem>>, vector<1x8x1xf32>
    %17 = vector.shape_cast %16 : vector<1x8x1xf32> to vector<8x1xf32>
    %18 = vector.broadcast %17 : vector<8x1xf32> to vector<8x512xf32>
    %19 = arith.addf %12, %18 : vector<8x512xf32>
    %20 = arith.mulf %15, %19 : vector<8x512xf32>
    %c0_13 = arith.constant 0 : index
    %c0_14 = arith.constant 0 : index
    %21 = vector.load %arg8[%c0_13, %c0_14] : memref<8x8xf32, #tpu.memory_space<vmem>>, vector<8x8xf32>
    %cst_15 = arith.constant dense<0.000000e+00> : vector<8x512xf32>
    %22 = tpu.matmul %21, %20, %cst_15 {dimension_numbers = #tpu.dot_dimension_numbers<[1], [0], [0], [1], [0, 0, 1, 1], [], []>} : vector<8x8xf32>, vector<8x512xf32>, vector<8x512xf32> -> vector<8x512xf32>
    %23 = arith.addf %22, %13 : vector<8x512xf32>
    %c0_16 = arith.constant 0 : index
    %c0_17 = arith.constant 0 : index
    %c0_18 = arith.constant 0 : index
    %24 = vector.load %arg5[%c0_16, %c0_17, %c0_18] : memref<1x8x1xf32, #tpu.memory_space<vmem>>, vector<1x8x1xf32>
    %25 = vector.shape_cast %24 : vector<1x8x1xf32> to vector<8x1xf32>
    %26 = vector.broadcast %25 : vector<8x1xf32> to vector<8x512xf32>
    %27 = arith.addf %23, %26 : vector<8x512xf32>
    %c0_19 = arith.constant 0 : index
    %c0_20 = arith.constant 0 : index
    %c0_21 = arith.constant 0 : index
    %28 = vector.load %arg9[%c0_19, %c0_20, %c0_21] : memref<1x8x512xf32, #tpu.memory_space<vmem>>, vector<1x8x512xf32>
    %29 = vector.shape_cast %28 : vector<1x8x512xf32> to vector<8x512xf32>
    %30 = vector.shape_cast %27 : vector<8x512xf32> to vector<1x8x512xf32>
    tpu.vector_store %arg9[%c0_19, %c0_20, %c0_21], %30 {strides = array<i32>} : memref<1x8x512xf32, #tpu.memory_space<vmem>>, vector<1x8x512xf32>,
    return
  }
  func.func @transform_0(%arg0: i32, %arg1: i32) -> (i32, i32, i32) {
    %c0_i32 = arith.constant 0 : i32
    %c0_i32_0 = arith.constant 0 : i32
    return %arg0, %c0_i32, %arg1 : i32, i32, i32
  }
  func.func @transform_1(%arg0: i32, %arg1: i32) -> (i32, i32, i32) {
    %c0_i32 = arith.constant 0 : i32
    %c0_i32_0 = arith.constant 0 : i32
    return %arg0, %c0_i32, %arg1 : i32, i32, i32
  }
  func.func @transform_2(%arg0: i32, %arg1: i32) -> (i32, i32, i32) {
    %c0_i32 = arith.constant 0 : i32
    %c0_i32_0 = arith.constant 0 : i32
    %c0_i32_1 = arith.constant 0 : i32
    return %arg0, %c0_i32, %c0_i32_0 : i32, i32, i32
  }
  func.func @transform_3(%arg0: i32, %arg1: i32) -> (i32, i32, i32) {
    %c0_i32 = arith.constant 0 : i32
    %c0_i32_0 = arith.constant 0 : i32
    %c0_i32_1 = arith.constant 0 : i32
    return %arg0, %c0_i32, %c0_i32_0 : i32, i32, i32
  }
  func.func @transform_4(%arg0: i32, %arg1: i32) -> (i32, i32) {
    %c0_i32 = arith.constant 0 : i32
    %c0_i32_0 = arith.constant 0 : i32
    %c0_i32_1 = arith.constant 0 : i32
    return %c0_i32, %c0_i32_0 : i32, i32
  }
  func.func @transform_5(%arg0: i32, %arg1: i32) -> (i32, i32) {
    %c0_i32 = arith.constant 0 : i32
    %c0_i32_0 = arith.constant 0 : i32
    %c0_i32_1 = arith.constant 0 : i32
    return %c0_i32, %c0_i32_0 : i32, i32
  }
  func.func @transform_6(%arg0: i32, %arg1: i32) -> (i32, i32) {
    %c0_i32 = arith.constant 0 : i32
    %c0_i32_0 = arith.constant 0 : i32
    %c0_i32_1 = arith.constant 0 : i32
    return %c0_i32, %c0_i32_0 : i32, i32
  }
  func.func @transform_7(%arg0: i32, %arg1: i32) -> (i32, i32, i32) {
    %c0_i32 = arith.constant 0 : i32
    %c0_i32_0 = arith.constant 0 : i32
    return %arg0, %c0_i32, %arg1 : i32, i32, i32
  }
}

</mosaic_0001>

<llo_original>
// kernel: tpu_custom_call.1
$region0: #{tpu_custom_call.1}
  #allocation0 [shape = 'u32[]', space=smem, size = 0x4, offset = 0x4, fixed_abs, tag = 'smem constant byte address 0x4 - core index']
  #allocation1 [shape = 'u32[144,128]{1,0:T(1,128)}', space=vmem, size = 0x12000, scoped, tag = 'internal scratch']
  %s0 = inlined_call_operand.vmem [shape: f32[2,8,512], index: 0, kind: input, shape index: {}]
  %s1 = inlined_call_operand.hbm [shape: f32[2,1,512], index: 1, kind: input, shape index: {}]
  %s2 = inlined_call_operand.vmem [shape: f32[2,8,1], index: 2, kind: input, shape index: {}]
  %s3 = inlined_call_operand.vmem [shape: f32[2,8,1], index: 3, kind: input, shape index: {}]
  %s4 = inlined_call_operand.vmem [shape: f32[8,2], index: 4, kind: input, shape index: {}]
  %s5 = inlined_call_operand.vmem [shape: f32[16,8], index: 5, kind: input, shape index: {}]
  %s6 = inlined_call_operand.vmem [shape: f32[8,8], index: 6, kind: input, shape index: {}]
  %s7 = inlined_call_operand.hbm [shape: f32[2,8,512], index: 7, kind: output, shape index: {}]
  %s8 = sld [smem:[#allocation0]]
  $region65: #{tpu_custom_call.1} parent=0
    _
  %s10 = ssub.s32 1, %s8
  %s11 = scalar_select 0, %s10, %s8
  $region1: #{tpu_custom_call.1} parent=0
    #allocation2 [shape = 'u8[4096]{0}', space=vmem, size = 0x1000, scoped, tag = 'input window, operand 1']
    #allocation3 [shape = 's32[2]{0}', space=sflag, size = 0x8, scoped, tag = 'scoped memory for tpu_custom_call.1']
    #allocation4 [shape = 's32[2]{0}', space=sflag, size = 0x8, scoped, tag = 'scoped memory for tpu_custom_call.1']
    #allocation5 [shape = 'u8[32768]{0}', space=vmem, size = 0x8000, scoped, tag = 'output window, operand 0']
    %12 = vsyncpa [#allocation3], 0
    %s13 = scalar_lea.sflag [#allocation3], 1
    %14 = vsyncpa %s13, 0
    %15 = vsyncpa [#allocation4], 0
    %s16 = scalar_lea.sflag [#allocation4], 1
    %17 = vsyncpa %s16, 0
    loop: start=0, step=1, limit=4
    $region2: #{tpu_custom_call.1} parent=1 // loop_pre_header
      _
    $region3: #{tpu_custom_call.1} parent=1 // loop_header
      %s19 = sphi 0, %s23
      %p20 = scmp.ge.s32.totalorder %s19, 4
      %s26 = sphi 0, %s38
      %s27 = sphi 0, %s34
      %s28 = sphi 0, %s26
      %s29 = sphi 0, %s27
      %s30 = sphi 0, %s28
      %s31 = sphi 0, %s29
      %s43 = sphi 0, %s45
      %s46 = sphi 0, %s43
      %s47 = sphi 0, %s46
      %s63 = sphi 0, %s47
      %s71 = sphi 0, %s73
      %s74 = sphi 0, %s71
      %s75 = sphi 0, %s74
      %s91 = sphi 0, %s75
      %s97 = sphi 0, %s99
      %s100 = sphi 0, %s97
      %s101 = sphi 0, %s100
      %s117 = sphi 0, %s101
      %s123 = sphi 0, %s125
      %s126 = sphi 0, %s123
      %s127 = sphi 0, %s126
      %s143 = sphi 0, %s127
      %s147 = sphi 0, %s147
      %s149 = sphi 0, %s147
      %s150 = sphi 0, %s149
      %s164 = sphi 0, %s150
      %s168 = sphi 0, %s168
      %s170 = sphi 0, %s168
      %s171 = sphi 0, %s170
      %s185 = sphi 0, %s171
      %s189 = sphi 0, %s189
      %s191 = sphi 0, %s189
      %s192 = sphi 0, %s191
      %s206 = sphi 0, %s192
      %s214 = sphi 0, %s216
      %s217 = sphi 0, %s214
      %s218 = sphi 0, %s217
      %s234 = sphi 0, %s218
    $region4: #{tpu_custom_call.1} parent=1 // loop_header_branch
      %22 = sbr.rel (%p20) target = $region8
    $region5: #{tpu_custom_call.1} parent=1 // loop_body
      %s24 = ssub.s32 %s19, 1
      %s25 = ssub.s32 %s19, 2
      %s32 = sadd.s32 1, %s27
      %p33 = scmp.ge.s32.totalorder %s32, 1
      %s34 = scalar_select %p33, 0, %s32
      %s35 = sadd.s32 1, %s26
      %s36 = scalar_select %p33, %s35, %s26
      %p37 = scmp.ge.s32.totalorder %s36, 2
      %s38 = scalar_select %p37, 0, %s36
      %s39 = ssub.s32 %s26, %s38
      %s40 = ssub.s32 %s27, %s34
      %s41 = sor.u32 %s39, %s40
      %p42 = scmp.eq.s32.totalorder %s41, 0
      %s44 = sadd.s32 %s43, 1
      %s45 = scalar_select %p42, %s43, %s44
      %p48 = pneg %p42
      %p49 = scmp.eq.s32.totalorder %s19, 1
      %p50 = por %p48, %p49
      %p51 = scmp.ne.s32.totalorder %s43, %s46
      %p52 = scmp.eq.s32.totalorder %s19, 0
      %p53 = por %p51, %p52
      %p54 = scmp.ne.s32.totalorder %s43, %s46
      %p55 = scmp.eq.s32.totalorder %s24, 1
      %p56 = por %p54, %p55
      %p57 = scmp.ne.s32.totalorder %s46, %s47
      %p58 = scmp.eq.s32.totalorder %s24, 0
      %p59 = por %p57, %p58
      %p60 = scmp.ne.s32.totalorder %s46, %s47
      %p61 = scmp.eq.s32.totalorder %s25, 1
      %p62 = por %p60, %p61
      %p64 = scmp.ne.s32.totalorder %s47, %s63
      %p65 = scmp.eq.s32.totalorder %s25, 0
      %p66 = por %p64, %p65
      %s67 = ssub.s32 %s26, %s38
      %s68 = ssub.s32 %s27, %s34
      %s69 = sor.u32 %s67, %s68
      %p70 = scmp.eq.s32.totalorder %s69, 0
      %s72 = sadd.s32 %s71, 1
      %s73 = scalar_select %p70, %s71, %s72
      %p76 = pneg %p70
      %p77 = scmp.eq.s32.totalorder %s19, 1
      %p78 = por %p76, %p77
      %p79 = scmp.ne.s32.totalorder %s71, %s74
      %p80 = scmp.eq.s32.totalorder %s19, 0
      %p81 = por %p79, %p80
      %p82 = scmp.ne.s32.totalorder %s71, %s74
      %p83 = scmp.eq.s32.totalorder %s24, 1
      %p84 = por %p82, %p83
      %p85 = scmp.ne.s32.totalorder %s74, %s75
      %p86 = scmp.eq.s32.totalorder %s24, 0
      %p87 = por %p85, %p86
      %p88 = scmp.ne.s32.totalorder %s74, %s75
      %p89 = scmp.eq.s32.totalorder %s25, 1
      %p90 = por %p88, %p89
      %p92 = scmp.ne.s32.totalorder %s75, %s91
      %p93 = scmp.eq.s32.totalorder %s25, 0
      %p94 = por %p92, %p93
      %s95 = ssub.s32 %s26, %s38
      %p96 = scmp.eq.s32.totalorder %s95, 0
      %s98 = sadd.s32 %s97, 1
      %s99 = scalar_select %p96, %s97, %s98
      %p102 = pneg %p96
      %p103 = scmp.eq.s32.totalorder %s19, 1
      %p104 = por %p102, %p103
      %p105 = scmp.ne.s32.totalorder %s97, %s100
      %p106 = scmp.eq.s32.totalorder %s19, 0
      %p107 = por %p105, %p106
      %p108 = scmp.ne.s32.totalorder %s97, %s100
      %p109 = scmp.eq.s32.totalorder %s24, 1
      %p110 = por %p108, %p109
      %p111 = scmp.ne.s32.totalorder %s100, %s101
      %p112 = scmp.eq.s32.totalorder %s24, 0
      %p113 = por %p111, %p112
      %p114 = scmp.ne.s32.totalorder %s100, %s101
      %p115 = scmp.eq.s32.totalorder %s25, 1
      %p116 = por %p114, %p115
      %p118 = scmp.ne.s32.totalorder %s101, %s117
      %p119 = scmp.eq.s32.totalorder %s25, 0
      %p120 = por %p118, %p119
      %s121 = ssub.s32 %s26, %s38
      %p122 = scmp.eq.s32.totalorder %s121, 0
      %s124 = sadd.s32 %s123, 1
      %s125 = scalar_select %p122, %s123, %s124
      %p128 = pneg %p122
      %p129 = scmp.eq.s32.totalorder %s19, 1
      %p130 = por %p128, %p129
      %p131 = scmp.ne.s32.totalorder %s123, %s126
      %p132 = scmp.eq.s32.totalorder %s19, 0
      %p133 = por %p131, %p132
      %p134 = scmp.ne.s32.totalorder %s123, %s126
      %p135 = scmp.eq.s32.totalorder %s24, 1
      %p136 = por %p134, %p135
      %p137 = scmp.ne.s32.totalorder %s126, %s127
      %p138 = scmp.eq.s32.totalorder %s24, 0
      %p139 = por %p137, %p138
      %p140 = scmp.ne.s32.totalorder %s126, %s127
      %p141 = scmp.eq.s32.totalorder %s25, 1
      %p142 = por %p140, %p141
      %p144 = scmp.ne.s32.totalorder %s127, %s143
      %p145 = scmp.eq.s32.totalorder %s25, 0
      %p146 = por %p144, %p145
      %s148 = sadd.s32 %s147, 1
      %p151 = scmp.eq.s32.totalorder %s19, 1
      %p152 = scmp.ne.s32.totalorder %s147, %s149
      %p153 = scmp.eq.s32.totalorder %s19, 0
      %p154 = por %p152, %p153
      %p155 = scmp.ne.s32.totalorder %s147, %s149
      %p156 = scmp.eq.s32.totalorder %s24, 1
      %p157 = por %p155, %p156
      %p158 = scmp.ne.s32.totalorder %s149, %s150
      %p159 = scmp.eq.s32.totalorder %s24, 0
      %p160 = por %p158, %p159
      %p161 = scmp.ne.s32.totalorder %s149, %s150
      %p162 = scmp.eq.s32.totalorder %s25, 1
      %p163 = por %p161, %p162
      %p165 = scmp.ne.s32.totalorder %s150, %s164
      %p166 = scmp.eq.s32.totalorder %s25, 0
      %p167 = por %p165, %p166
      %s169 = sadd.s32 %s168, 1
      %p172 = scmp.eq.s32.totalorder %s19, 1
      %p173 = scmp.ne.s32.totalorder %s168, %s170
      %p174 = scmp.eq.s32.totalorder %s19, 0
      %p175 = por %p173, %p174
      %p176 = scmp.ne.s32.totalorder %s168, %s170
      %p177 = scmp.eq.s32.totalorder %s24, 1
      %p178 = por %p176, %p177
      %p179 = scmp.ne.s32.totalorder %s170, %s171
      %p180 = scmp.eq.s32.totalorder %s24, 0
      %p181 = por %p179, %p180
      %p182 = scmp.ne.s32.totalorder %s170, %s171
      %p183 = scmp.eq.s32.totalorder %s25, 1
      %p184 = por %p182, %p183
      %p186 = scmp.ne.s32.totalorder %s171, %s185
      %p187 = scmp.eq.s32.totalorder %s25, 0
      %p188 = por %p186, %p187
      %s190 = sadd.s32 %s189, 1
      %p193 = scmp.eq.s32.totalorder %s19, 1
      %p194 = scmp.ne.s32.totalorder %s189, %s191
      %p195 = scmp.eq.s32.totalorder %s19, 0
      %p196 = por %p194, %p195
      %p197 = scmp.ne.s32.totalorder %s189, %s191
      %p198 = scmp.eq.s32.totalorder %s24, 1
      %p199 = por %p197, %p198
      %p200 = scmp.ne.s32.totalorder %s191, %s192
      %p201 = scmp.eq.s32.totalorder %s24, 0
      %p202 = por %p200, %p201
      %p203 = scmp.ne.s32.totalorder %s191, %s192
      %p204 = scmp.eq.s32.totalorder %s25, 1
      %p205 = por %p203, %p204
      %p207 = scmp.ne.s32.totalorder %s192, %s206
      %p208 = scmp.eq.s32.totalorder %s25, 0
      %p209 = por %p207, %p208
      %s210 = ssub.s32 %s26, %s38
      %s211 = ssub.s32 %s27, %s34
      %s212 = sor.u32 %s210, %s211
      %p213 = scmp.eq.s32.totalorder %s212, 0
      %s215 = sadd.s32 %s214, 1
      %s216 = scalar_select %p213, %s214, %s215
      %p219 = pneg %p213
      %p220 = scmp.eq.s32.totalorder %s19, 1
      %p221 = por %p219, %p220
      %p222 = scmp.ne.s32.totalorder %s214, %s217
      %p223 = scmp.eq.s32.totalorder %s19, 0
      %p224 = por %p222, %p223
      %p225 = scmp.ne.s32.totalorder %s214, %s217
      %p226 = scmp.eq.s32.totalorder %s24, 1
      %p227 = por %p225, %p226
      %p228 = scmp.ne.s32.totalorder %s217, %s218
      %p229 = scmp.eq.s32.totalorder %s24, 0
      %p230 = por %p228, %p229
      %p231 = scmp.ne.s32.totalorder %s217, %s218
      %p232 = scmp.eq.s32.totalorder %s25, 1
      %p233 = por %p231, %p232
      %p235 = scmp.ne.s32.totalorder %s218, %s234
      %p236 = scmp.eq.s32.totalorder %s25, 0
      %p237 = por %p235, %p236
      %p238 = scmp.le.s32.totalorder 1, %s19
      %p239 = scmp.lt.s32.totalorder %s19, 3
      %p240 = pnand %p238, %p239
      %p241 = pneg %p240
      // Predicated region
      $region9: #{tpu_custom_call.1} parent=5 // pred_check
        _
      $region10: #{tpu_custom_call.1} parent=5 // pred_check_branch
        %243 = sbr.rel (%p240) target = $region12
      $region11: #{tpu_custom_call.1} parent=5 // pred_region
        %s244 = ssub.s32 %s19, 1
        // Predicated region
        $region13: #{tpu_custom_call.1} parent=11 // pred_check
          %p245 = pneg %p160
        $region14: #{tpu_custom_call.1} parent=11 // pred_check_branch
          %247 = sbr.rel (%p245) target = $region16
        $region15: #{tpu_custom_call.1} parent=11 // pred_region
          _
        $region16: #{tpu_custom_call.1} parent=11 // pred_fallthru
          _
        // Predicated region
        $region17: #{tpu_custom_call.1} parent=11 // pred_check
          %p248 = pneg %p181
        $region18: #{tpu_custom_call.1} parent=11 // pred_check_branch
          %250 = sbr.rel (%p248) target = $region20
        $region19: #{tpu_custom_call.1} parent=11 // pred_region
          _
        $region20: #{tpu_custom_call.1} parent=11 // pred_fallthru
          _
        // Predicated region
        $region21: #{tpu_custom_call.1} parent=11 // pred_check
          %p251 = pneg %p202
        $region22: #{tpu_custom_call.1} parent=11 // pred_check_branch
          %253 = sbr.rel (%p251) target = $region24
        $region23: #{tpu_custom_call.1} parent=11 // pred_region
          _
        $region24: #{tpu_custom_call.1} parent=11 // pred_fallthru
          _
      $region12: #{tpu_custom_call.1} parent=5 // pred_fallthru
        _
      %p254 = scmp.lt.s32.totalorder %s19, 2
      // Predicated region
      $region25: #{tpu_custom_call.1} parent=5 // pred_check
        %p255 = pneg %p254
      $region26: #{tpu_custom_call.1} parent=5 // pred_check_branch
        %257 = sbr.rel (%p255) target = $region28
      $region27: #{tpu_custom_call.1} parent=5 // pred_region
        // Predicated region
        $region29: #{tpu_custom_call.1} parent=27 // pred_check
          %p258 = pneg %p53
        $region30: #{tpu_custom_call.1} parent=27 // pred_check_branch
          %260 = sbr.rel (%p258) target = $region32
        $region31: #{tpu_custom_call.1} parent=27 // pred_region
          %s261 = smul.u32 4, %s27
          %p262 = scmp.lt.s32.totalorder %s26, 1
          %s263 = scalar_select %p262, %s26, 1
          %p264 = scmp.lt.s32.totalorder %s261, 3
          %s265 = scalar_select %p264, %s261, 3
          %s266 = smul.addr %s263, 4
          %s267 = sadd.s32 %s265, %s266
          %s268 = smul.addr %s267, 8
          %s269 = scalar_lea.vmem %s0, %s268
          %s270 = smul.u32 4, %s27
        $region32: #{tpu_custom_call.1} parent=27 // pred_fallthru
          _
        // Predicated region
        $region33: #{tpu_custom_call.1} parent=27 // pred_check
          %p271 = pneg %p81
        $region34: #{tpu_custom_call.1} parent=27 // pred_check_branch
          %273 = sbr.rel (%p271) target = $region36
        $region35: #{tpu_custom_call.1} parent=27 // pred_region
          %s274 = sand.u32 %s71, 1
          %s275 = scalar_lea.sflag [#allocation3], %s274
          %s276 = sand.u32 %s71, 1
          %s277 = smul.addr %s276, 4
          %s278 = scalar_lea.vmem [#allocation2], %s277
          %s279 = smul.u32 4, %s27
          %s281 = ssub.s32 64, 64
          %282 = vsyncadd %s275, %s281
          %s283 = smul.addr %s26, 4
          %s284 = sadd.s32 %s279, %s283
          %s285 = smul.addr %s284, 16
          %s286 = scalar_lea.hbm %s1, %s285
          %s288 = sshll.u32 %s278, 4
          %s289 = int_to_ptr.vmem [resolvable:$true] %s288
          %291 = dma.hbm_to_vmem [thread:$0]  %s286, 64, %s289, %s275
        $region36: #{tpu_custom_call.1} parent=27 // pred_fallthru
          _
        // Predicated region
        $region37: #{tpu_custom_call.1} parent=27 // pred_check
          %p292 = pneg %p107
        $region38: #{tpu_custom_call.1} parent=27 // pred_check_branch
          %294 = sbr.rel (%p292) target = $region40
        $region39: #{tpu_custom_call.1} parent=27 // pred_region
          %p295 = scmp.lt.s32.totalorder %s26, 1
          %s296 = scalar_select %p295, %s26, 1
          %s297 = smul.addr %s296, 8
          %s298 = scalar_lea.vmem %s2, %s297
        $region40: #{tpu_custom_call.1} parent=27 // pred_fallthru
          _
        // Predicated region
        $region41: #{tpu_custom_call.1} parent=27 // pred_check
          %p299 = pneg %p133
        $region42: #{tpu_custom_call.1} parent=27 // pred_check_branch
          %301 = sbr.rel (%p299) target = $region44
        $region43: #{tpu_custom_call.1} parent=27 // pred_region
          %p302 = scmp.lt.s32.totalorder %s26, 1
          %s303 = scalar_select %p302, %s26, 1
          %s304 = smul.addr %s303, 8
          %s305 = scalar_lea.vmem %s3, %s304
        $region44: #{tpu_custom_call.1} parent=27 // pred_fallthru
          _
      $region28: #{tpu_custom_call.1} parent=5 // pred_fallthru
        _
      %p306 = scmp.le.s32.totalorder 1, %s19
      %p307 = scmp.lt.s32.totalorder %s19, 3
      %p308 = pnand %p306, %p307
      %p309 = pneg %p308
      // Predicated region
      $region45: #{tpu_custom_call.1} parent=5 // pred_check
        _
      $region46: #{tpu_custom_call.1} parent=5 // pred_check_branch
        %311 = sbr.rel (%p308) target = $region48
      $region47: #{tpu_custom_call.1} parent=5 // pred_region
        %s312 = ssub.s32 %s19, 1
        %s313 = sand.u32 %s74, 1
        %s314 = scalar_lea.sflag [#allocation3], %s313
        %s315 = sand.u32 %s74, 1
        %s316 = smul.addr %s315, 4
        %s317 = scalar_lea.vmem [#allocation2], %s316
        // Predicated region
        $region49: #{tpu_custom_call.1} parent=47 // pred_check
          %p318 = pneg %p87
        $region50: #{tpu_custom_call.1} parent=47 // pred_check_branch
          %320 = sbr.rel (%p318) target = $region52
        $region51: #{tpu_custom_call.1} parent=47 // pred_region
          %321 = dma.done %s314, 64
        $region52: #{tpu_custom_call.1} parent=47 // pred_fallthru
          _
        %s322 = smul.u32 4, %s29
        %p323 = scmp.lt.s32.totalorder %s28, 1
        %s324 = scalar_select %p323, %s28, 1
        %p325 = scmp.lt.s32.totalorder %s322, 3
        %s326 = scalar_select %p325, %s322, 3
        %s327 = smul.addr %s324, 4
        %s328 = sadd.s32 %s326, %s327
        %s329 = smul.addr %s328, 8
        %s330 = scalar_lea.vmem %s0, %s329
        %p331 = pneg %p59
        %p332 = pneg %p56
        %s333 = sand.u32 %s74, 1
        %s334 = scalar_lea.sflag [#allocation3], %s333
        %s335 = sand.u32 %s74, 1
        %s336 = smul.addr %s335, 4
        %s337 = scalar_lea.vmem [#allocation2], %s336
        %p338 = pneg %p87
        %p339 = pneg %p84
        %p340 = scmp.lt.s32.totalorder %s28, 1
        %s341 = scalar_select %p340, %s28, 1
        %s342 = smul.addr %s341, 8
        %s343 = scalar_lea.vmem %s2, %s342
        %p344 = pneg %p113
        %p345 = pneg %p110
        %p346 = scmp.lt.s32.totalorder %s28, 1
        %s347 = scalar_select %p346, %s28, 1
        %s348 = smul.addr %s347, 8
        %s349 = scalar_lea.vmem %s3, %s348
        %p350 = pneg %p139
        %p351 = pneg %p136
        %p352 = pneg %p160
        %p353 = pneg %p157
        %p354 = pneg %p181
        %p355 = pneg %p178
        %p356 = pneg %p202
        %p357 = pneg %p199
        %p358 = pneg %p230
        %p359 = pneg %p227
        %s360 = sand.u32 %s217, 1
        %s361 = scalar_lea.sflag [#allocation4], %s360
        %s362 = sand.u32 %s217, 1
        %s363 = smul.addr %s362, 32
        %s364 = scalar_lea.vmem [#allocation5], %s363
        %s365 = smul.u32 4, %s29
        %p366 = scmp.lt.s32.totalorder %s28, 1
        %s367 = scalar_select %p366, %s28, 1
        %p368 = scmp.lt.s32.totalorder %s365, 3
        %s369 = scalar_select %p368, %s365, 3
        %s370 = smul.addr %s367, 4
        %s371 = sadd.s32 %s369, %s370
        %s372 = smul.addr %s371, 8
        %s373 = scalar_lea.vmem %s0, %s372
        %s374 = smul.u32 4, %s29
        %s375 = smul.u32 4, %s29
        %p376 = scmp.lt.s32.totalorder %s28, 1
        %s377 = scalar_select %p376, %s28, 1
        %s378 = smul.addr %s377, 8
        %s379 = scalar_lea.vmem %s2, %s378
        %p380 = scmp.lt.s32.totalorder %s28, 1
        %s381 = scalar_select %p380, %s28, 1
        %s382 = smul.addr %s381, 8
        %s383 = scalar_lea.vmem %s3, %s382
        %s384 = smul.u32 4, %s29
        %v385 = vld [vmem:[%s4] sm:$0xff]
        %v386 = vld [vmem:[%s317] sm:$0xf]
        %388 = vset.pattern.permute.xlu0 0
        %389 = vperm.xlu0 %388, %v385
        %v390 = vpop.permute.xlu0 %389
        %v393 = vlaneseq
        %v394 = vshrl.u32 %v393, 7
        %v395 = vsub.s32 0, %v394
        %v396 = vrot.slane %v386, %v395
        %v397 = vlaneseq
        %v398 = vshrl.u32 %v397, 7
        %v399 = vsub.s32 1, %v398
        %v400 = vrot.slane %v386, %v399
        %v401 = vlaneseq
        %v402 = vshrl.u32 %v401, 7
        %v403 = vsub.s32 2, %v402
        %v404 = vrot.slane %v386, %v403
        %v405 = vlaneseq
        %v406 = vshrl.u32 %v405, 7
        %v407 = vsub.s32 3, %v406
        %v408 = vrot.slane %v386, %v407
        %v413 = vmul.f32 %v390, %v396
        %v414 = vmul.f32 %v390, %v400
        %v415 = vmul.f32 %v390, %v404
        %v416 = vmul.f32 %v390, %v408
        %417 = vset.pattern.permute.xlu0 1
        %418 = vperm.xlu0 %417, %v385
        %v419 = vpop.permute.xlu0 %418
        %v421 = vadd.f32 %v413, %v419
        %v422 = vadd.f32 %v414, %v419
        %v423 = vadd.f32 %v415, %v419
        %v424 = vadd.f32 %v416, %v419
        %v425 = vand.u32 2147483647, %v421
        %vm426 = vcmp.le.f32.partialorder %v425, 0.7853982
        %vm427 = vcmp.lt.s32.totalorder %v421, 0
        %v428 = vand.u32 %v421, 2139095040
        %v429 = vshrl.u32 %v428, 23
        %v430 = vsub.s32 %v429, 127
        %v431 = vand.u32 2147483647, %v421
        %v432 = vand.u32 %v431, 8388607
        %v433 = vor.u32 %v432, 8388608
        %v434 = vsub.s32 0, %v433
        %v435 = vadd.s32 %v430, 1
        %vm436 = vcmp.gt.s32.totalorder %v435, 0
        %v437 = vsel %vm436, %v435, 0
        %v438 = vshrl.u32 %v437, 5
        %v439 = vand.u32 %v437, 31
        %v440 = vsub.s32 32, %v439
        %v441 = vshrl.u32 683565275, %v440
        %v442 = vshll.u32 683565275, %v439
        %v443 = vshrl.u32 2475754826, %v440
        %v444 = vor.u32 %v442, %v443
        %v445 = vshll.u32 2475754826, %v439
        %v446 = vshrl.u32 2131351028, %v440
        %v447 = vor.u32 %v445, %v446
        %v448 = vshll.u32 2131351028, %v439
        %v449 = vshrl.u32 2102212464, %v440
        %v450 = vor.u32 %v448, %v449
        %v451 = vshll.u32 2102212464, %v439
        %v452 = vshrl.u32 920167782, %v440
        %v453 = vor.u32 %v451, %v452
        %v454 = vshll.u32 920167782, %v439
        %v455 = vshrl.u32 1326507024, %v440
        %v456 = vor.u32 %v454, %v455
        %vm457 = vcmp.lt.s32.totalorder %v438, 1
        %vm458 = vcmp.lt.s32.totalorder %v438, 2
        %vm459 = vcmp.lt.s32.totalorder %v438, 3
        %vm460 = vcmp.lt.s32.totalorder %v438, 4
        %v461 = vsel %vm457, %v441, %v444
        %v462 = vsel %vm460, %v450, 2102212464
        %v463 = vsel %vm459, %v447, %v462
        %v464 = vsel %vm458, %v461, %v463
        %v465 = vsel %vm457, %v444, %v447
        %v466 = vsel %vm460, %v453, 920167782
        %v467 = vsel %vm459, %v450, %v466
        %v468 = vsel %vm458, %v465, %v467
        %v469 = vsel %vm457, %v447, %v450
        %v470 = vsel %vm460, %v456, 1326507024
        %v471 = vsel %vm459, %v453, %v470
        %v472 = vsel %vm458, %v469, %v471
        %v473 = vshll.u32 %v433, 8
        %v474 = vmul.u32.u64.compose %v473, %v472
        %v475 = vextract.low.u32 %v474
        %v476 = vextract.high.u32 %v474
        %v477 = vmul.u32.u64.compose %v473, %v468
        %v478 = vextract.low.u32 %v477
        %v479 = vextract.high.u32 %v477
        %v480 = vmul.u32 %v473, %v464
        %v481 = vadd.s32 %v476, %v478
        %vm482 = vc.u32 %v476, %v478
        %v483 = vadd.s32 %v479, 1
        %v484 = vsel %vm482, %v483, %v479
        %v485 = vadd.s32 %v480, %v484
        %v486 = vadd.s32 %v485, 536870912
        %v487 = vshrl.u32 %v486, 30
        %v488 = vshll.u32 %v487, 30
        %v489 = vsub.s32 %v485, %v488
        %vm490 = vcmp.lt.s32.totalorder %v489, 0
        %v491 = vsub.s32 0, %v489
        %v492 = vsel %vm490, %v491, %v489
        %v493 = vclz %v492
        %v494 = vsub.s32 %v493, 2
        %vm495 = vcmp.gt.s32.totalorder 0, %v494
        %v496 = vsel %vm495, 0, %v494
        %v497 = vsub.s32 32, %v496
        %v498 = vshll.u32 %v489, %v496
        %v499 = vshrl.u32 %v481, %v497
        %v500 = vor.u32 %v498, %v499
        %v501 = vsub.s32 4294967266, %v496
        %v502 = vadd.s32 %v501, 127
        %v503 = vshll.u32 %v502, 23
        %v504 = vor.u32 4788187, %v503
        %v505 = vand.u32 2147483647, %v504
        %v507 = vcvt.s32.f32 %v500
        %v508 = vmul.f32 %v507, %v505
        %v509 = vxor.u32 %v508, 2147483648
        %v510 = vsel %vm427, %v509, %v508
        %v511 = vsub.s32 4, %v487
        %v512 = vsel %vm427, %v511, %v487
        %v513 = vsel %vm426, %v421, %v510
        %v514 = vsel %vm426, 0, %v512
        %v515 = vcosq.f32.pop %v513
        %v516 = vsinq.f32.pop %v513
        %vm517 = vweird.f32 %v421
        %v518 = vadd.s32 %v514, 3
        %v519 = vand.u32 %v518, 3
        %vm520 = vcmp.lt.s32.totalorder %v519, 2
        %vm521 = vcmp.eq.s32.totalorder %v519, 0
        %v522 = vxor.u32 %v516, 2147483648
        %v523 = vsel %vm521, %v515, %v522
        %vm524 = vcmp.eq.s32.totalorder %v519, 2
        %v525 = vxor.u32 %v515, 2147483648
        %v526 = vsel %vm524, %v525, %v516
        %v527 = vsel %vm520, %v523, %v526
        %v528 = vsel %vm517, nan, %v527
        %v529 = vand.u32 2147483647, %v422
        %vm530 = vcmp.le.f32.partialorder %v529, 0.7853982
        %vm531 = vcmp.lt.s32.totalorder %v422, 0
        %v532 = vand.u32 %v422, 2139095040
        %v533 = vshrl.u32 %v532, 23
        %v534 = vsub.s32 %v533, 127
        %v535 = vand.u32 2147483647, %v422
        %v536 = vand.u32 %v535, 8388607
        %v537 = vor.u32 %v536, 8388608
        %v538 = vsub.s32 0, %v537
        %v539 = vadd.s32 %v534, 1
        %vm540 = vcmp.gt.s32.totalorder %v539, 0
        %v541 = vsel %vm540, %v539, 0
        %v542 = vshrl.u32 %v541, 5
        %v543 = vand.u32 %v541, 31
        %v544 = vsub.s32 32, %v543
        %v545 = vshrl.u32 683565275, %v544
        %v546 = vshll.u32 683565275, %v543
        %v547 = vshrl.u32 2475754826, %v544
        %v548 = vor.u32 %v546, %v547
        %v549 = vshll.u32 2475754826, %v543
        %v550 = vshrl.u32 2131351028, %v544
        %v551 = vor.u32 %v549, %v550
        %v552 = vshll.u32 2131351028, %v543
        %v553 = vshrl.u32 2102212464, %v544
        %v554 = vor.u32 %v552, %v553
        %v555 = vshll.u32 2102212464, %v543
        %v556 = vshrl.u32 920167782, %v544
        %v557 = vor.u32 %v555, %v556
        %v558 = vshll.u32 920167782, %v543
        %v559 = vshrl.u32 1326507024, %v544
        %v560 = vor.u32 %v558, %v559
        %vm561 = vcmp.lt.s32.totalorder %v542, 1
        %vm562 = vcmp.lt.s32.totalorder %v542, 2
        %vm563 = vcmp.lt.s32.totalorder %v542, 3
        %vm564 = vcmp.lt.s32.totalorder %v542, 4
        %v565 = vsel %vm561, %v545, %v548
        %v566 = vsel %vm564, %v554, 2102212464
        %v567 = vsel %vm563, %v551, %v566
        %v568 = vsel %vm562, %v565, %v567
        %v569 = vsel %vm561, %v548, %v551
        %v570 = vsel %vm564, %v557, 920167782
        %v571 = vsel %vm563, %v554, %v570
        %v572 = vsel %vm562, %v569, %v571
        %v573 = vsel %vm561, %v551, %v554
        %v574 = vsel %vm564, %v560, 1326507024
        %v575 = vsel %vm563, %v557, %v574
        %v576 = vsel %vm562, %v573, %v575
        %v577 = vshll.u32 %v537, 8
        %v578 = vmul.u32.u64.compose %v577, %v576
        %v579 = vextract.low.u32 %v578
        %v580 = vextract.high.u32 %v578
        %v581 = vmul.u32.u64.compose %v577, %v572
        %v582 = vextract.low.u32 %v581
        %v583 = vextract.high.u32 %v581
        %v584 = vmul.u32 %v577, %v568
        %v585 = vadd.s32 %v580, %v582
        %vm586 = vc.u32 %v580, %v582
        %v587 = vadd.s32 %v583, 1
        %v588 = vsel %vm586, %v587, %v583
        %v589 = vadd.s32 %v584, %v588
        %v590 = vadd.s32 %v589, 536870912
        %v591 = vshrl.u32 %v590, 30
        %v592 = vshll.u32 %v591, 30
        %v593 = vsub.s32 %v589, %v592
        %vm594 = vcmp.lt.s32.totalorder %v593, 0
        %v595 = vsub.s32 0, %v593
        %v596 = vsel %vm594, %v595, %v593
        %v597 = vclz %v596
        %v598 = vsub.s32 %v597, 2
        %vm599 = vcmp.gt.s32.totalorder 0, %v598
        %v600 = vsel %vm599, 0, %v598
        %v601 = vsub.s32 32, %v600
        %v602 = vshll.u32 %v593, %v600
        %v603 = vshrl.u32 %v585, %v601
        %v604 = vor.u32 %v602, %v603
        %v605 = vsub.s32 4294967266, %v600
        %v606 = vadd.s32 %v605, 127
        %v607 = vshll.u32 %v606, 23
        %v608 = vor.u32 4788187, %v607
        %v609 = vand.u32 2147483647, %v608
        %v611 = vcvt.s32.f32 %v604
        %v612 = vmul.f32 %v611, %v609
        %v613 = vxor.u32 %v612, 2147483648
        %v614 = vsel %vm531, %v613, %v612
        %v615 = vsub.s32 4, %v591
        %v616 = vsel %vm531, %v615, %v591
        %v617 = vsel %vm530, %v422, %v614
        %v618 = vsel %vm530, 0, %v616
        %v619 = vcosq.f32.pop %v617
        %v620 = vsinq.f32.pop %v617
        %vm621 = vweird.f32 %v422
        %v622 = vadd.s32 %v618, 3
        %v623 = vand.u32 %v622, 3
        %vm624 = vcmp.lt.s32.totalorder %v623, 2
        %vm625 = vcmp.eq.s32.totalorder %v623, 0
        %v626 = vxor.u32 %v620, 2147483648
        %v627 = vsel %vm625, %v619, %v626
        %vm628 = vcmp.eq.s32.totalorder %v623, 2
        %v629 = vxor.u32 %v619, 2147483648
        %v630 = vsel %vm628, %v629, %v620
        %v631 = vsel %vm624, %v627, %v630
        %v632 = vsel %vm621, nan, %v631
        %v633 = vand.u32 2147483647, %v423
        %vm634 = vcmp.le.f32.partialorder %v633, 0.7853982
        %vm635 = vcmp.lt.s32.totalorder %v423, 0
        %v636 = vand.u32 %v423, 2139095040
        %v637 = vshrl.u32 %v636, 23
        %v638 = vsub.s32 %v637, 127
        %v639 = vand.u32 2147483647, %v423
        %v640 = vand.u32 %v639, 8388607
        %v641 = vor.u32 %v640, 8388608
        %v642 = vsub.s32 0, %v641
        %v643 = vadd.s32 %v638, 1
        %vm644 = vcmp.gt.s32.totalorder %v643, 0
        %v645 = vsel %vm644, %v643, 0
        %v646 = vshrl.u32 %v645, 5
        %v647 = vand.u32 %v645, 31
        %v648 = vsub.s32 32, %v647
        %v649 = vshrl.u32 683565275, %v648
        %v650 = vshll.u32 683565275, %v647
        %v651 = vshrl.u32 2475754826, %v648
        %v652 = vor.u32 %v650, %v651
        %v653 = vshll.u32 2475754826, %v647
        %v654 = vshrl.u32 2131351028, %v648
        %v655 = vor.u32 %v653, %v654
        %v656 = vshll.u32 2131351028, %v647
        %v657 = vshrl.u32 2102212464, %v648
        %v658 = vor.u32 %v656, %v657
        %v659 = vshll.u32 2102212464, %v647
        %v660 = vshrl.u32 920167782, %v648
        %v661 = vor.u32 %v659, %v660
        %v662 = vshll.u32 920167782, %v647
        %v663 = vshrl.u32 1326507024, %v648
        %v664 = vor.u32 %v662, %v663
        %vm665 = vcmp.lt.s32.totalorder %v646, 1
        %vm666 = vcmp.lt.s32.totalorder %v646, 2
        %vm667 = vcmp.lt.s32.totalorder %v646, 3
        %vm668 = vcmp.lt.s32.totalorder %v646, 4
        %v669 = vsel %vm665, %v649, %v652
        %v670 = vsel %vm668, %v658, 2102212464
        %v671 = vsel %vm667, %v655, %v670
        %v672 = vsel %vm666, %v669, %v671
        %v673 = vsel %vm665, %v652, %v655
        %v674 = vsel %vm668, %v661, 920167782
        %v675 = vsel %vm667, %v658, %v674
        %v676 = vsel %vm666, %v673, %v675
        %v677 = vsel %vm665, %v655, %v658
        %v678 = vsel %vm668, %v664, 1326507024
        %v679 = vsel %vm667, %v661, %v678
        %v680 = vsel %vm666, %v677, %v679
        %v681 = vshll.u32 %v641, 8
        %v682 = vmul.u32.u64.compose %v681, %v680
        %v683 = vextract.low.u32 %v682
        %v684 = vextract.high.u32 %v682
        %v685 = vmul.u32.u64.compose %v681, %v676
        %v686 = vextract.low.u32 %v685
        %v687 = vextract.high.u32 %v685
        %v688 = vmul.u32 %v681, %v672
        %v689 = vadd.s32 %v684, %v686
        %vm690 = vc.u32 %v684, %v686
        %v691 = vadd.s32 %v687, 1
        %v692 = vsel %vm690, %v691, %v687
        %v693 = vadd.s32 %v688, %v692
        %v694 = vadd.s32 %v693, 536870912
        %v695 = vshrl.u32 %v694, 30
        %v696 = vshll.u32 %v695, 30
        %v697 = vsub.s32 %v693, %v696
        %vm698 = vcmp.lt.s32.totalorder %v697, 0
        %v699 = vsub.s32 0, %v697
        %v700 = vsel %vm698, %v699, %v697
        %v701 = vclz %v700
        %v702 = vsub.s32 %v701, 2
        %vm703 = vcmp.gt.s32.totalorder 0, %v702
        %v704 = vsel %vm703, 0, %v702
        %v705 = vsub.s32 32, %v704
        %v706 = vshll.u32 %v697, %v704
        %v707 = vshrl.u32 %v689, %v705
        %v708 = vor.u32 %v706, %v707
        %v709 = vsub.s32 4294967266, %v704
        %v710 = vadd.s32 %v709, 127
        %v711 = vshll.u32 %v710, 23
        %v712 = vor.u32 4788187, %v711
        %v713 = vand.u32 2147483647, %v712
        %v715 = vcvt.s32.f32 %v708
        %v716 = vmul.f32 %v715, %v713
        %v717 = vxor.u32 %v716, 2147483648
        %v718 = vsel %vm635, %v717, %v716
        %v719 = vsub.s32 4, %v695
        %v720 = vsel %vm635, %v719, %v695
        %v721 = vsel %vm634, %v423, %v718
        %v722 = vsel %vm634, 0, %v720
        %v723 = vcosq.f32.pop %v721
        %v724 = vsinq.f32.pop %v721
        %vm725 = vweird.f32 %v423
        %v726 = vadd.s32 %v722, 3
        %v727 = vand.u32 %v726, 3
        %vm728 = vcmp.lt.s32.totalorder %v727, 2
        %vm729 = vcmp.eq.s32.totalorder %v727, 0
        %v730 = vxor.u32 %v724, 2147483648
        %v731 = vsel %vm729, %v723, %v730
        %vm732 = vcmp.eq.s32.totalorder %v727, 2
        %v733 = vxor.u32 %v723, 2147483648
        %v734 = vsel %vm732, %v733, %v724
        %v735 = vsel %vm728, %v731, %v734
        %v736 = vsel %vm725, nan, %v735
        %v737 = vand.u32 2147483647, %v424
        %vm738 = vcmp.le.f32.partialorder %v737, 0.7853982
        %vm739 = vcmp.lt.s32.totalorder %v424, 0
        %v740 = vand.u32 %v424, 2139095040
        %v741 = vshrl.u32 %v740, 23
        %v742 = vsub.s32 %v741, 127
        %v743 = vand.u32 2147483647, %v424
        %v744 = vand.u32 %v743, 8388607
        %v745 = vor.u32 %v744, 8388608
        %v746 = vsub.s32 0, %v745
        %v747 = vadd.s32 %v742, 1
        %vm748 = vcmp.gt.s32.totalorder %v747, 0
        %v749 = vsel %vm748, %v747, 0
        %v750 = vshrl.u32 %v749, 5
        %v751 = vand.u32 %v749, 31
        %v752 = vsub.s32 32, %v751
        %v753 = vshrl.u32 683565275, %v752
        %v754 = vshll.u32 683565275, %v751
        %v755 = vshrl.u32 2475754826, %v752
        %v756 = vor.u32 %v754, %v755
        %v757 = vshll.u32 2475754826, %v751
        %v758 = vshrl.u32 2131351028, %v752
        %v759 = vor.u32 %v757, %v758
        %v760 = vshll.u32 2131351028, %v751
        %v761 = vshrl.u32 2102212464, %v752
        %v762 = vor.u32 %v760, %v761
        %v763 = vshll.u32 2102212464, %v751
        %v764 = vshrl.u32 920167782, %v752
        %v765 = vor.u32 %v763, %v764
        %v766 = vshll.u32 920167782, %v751
        %v767 = vshrl.u32 1326507024, %v752
        %v768 = vor.u32 %v766, %v767
        %vm769 = vcmp.lt.s32.totalorder %v750, 1
        %vm770 = vcmp.lt.s32.totalorder %v750, 2
        %vm771 = vcmp.lt.s32.totalorder %v750, 3
        %vm772 = vcmp.lt.s32.totalorder %v750, 4
        %v773 = vsel %vm769, %v753, %v756
        %v774 = vsel %vm772, %v762, 2102212464
        %v775 = vsel %vm771, %v759, %v774
        %v776 = vsel %vm770, %v773, %v775
        %v777 = vsel %vm769, %v756, %v759
        %v778 = vsel %vm772, %v765, 920167782
        %v779 = vsel %vm771, %v762, %v778
        %v780 = vsel %vm770, %v777, %v779
        %v781 = vsel %vm769, %v759, %v762
        %v782 = vsel %vm772, %v768, 1326507024
        %v783 = vsel %vm771, %v765, %v782
        %v784 = vsel %vm770, %v781, %v783
        %v785 = vshll.u32 %v745, 8
        %v786 = vmul.u32.u64.compose %v785, %v784
        %v787 = vextract.low.u32 %v786
        %v788 = vextract.high.u32 %v786
        %v789 = vmul.u32.u64.compose %v785, %v780
        %v790 = vextract.low.u32 %v789
        %v791 = vextract.high.u32 %v789
        %v792 = vmul.u32 %v785, %v776
        %v793 = vadd.s32 %v788, %v790
        %vm794 = vc.u32 %v788, %v790
        %v795 = vadd.s32 %v791, 1
        %v796 = vsel %vm794, %v795, %v791
        %v797 = vadd.s32 %v792, %v796
        %v798 = vadd.s32 %v797, 536870912
        %v799 = vshrl.u32 %v798, 30
        %v800 = vshll.u32 %v799, 30
        %v801 = vsub.s32 %v797, %v800
        %vm802 = vcmp.lt.s32.totalorder %v801, 0
        %v803 = vsub.s32 0, %v801
        %v804 = vsel %vm802, %v803, %v801
        %v805 = vclz %v804
        %v806 = vsub.s32 %v805, 2
        %vm807 = vcmp.gt.s32.totalorder 0, %v806
        %v808 = vsel %vm807, 0, %v806
        %v809 = vsub.s32 32, %v808
        %v810 = vshll.u32 %v801, %v808
        %v811 = vshrl.u32 %v793, %v809
        %v812 = vor.u32 %v810, %v811
        %v813 = vsub.s32 4294967266, %v808
        %v814 = vadd.s32 %v813, 127
        %v815 = vshll.u32 %v814, 23
        %v816 = vor.u32 4788187, %v815
        %v817 = vand.u32 2147483647, %v816
        %v819 = vcvt.s32.f32 %v812
        %v820 = vmul.f32 %v819, %v817
        %v821 = vxor.u32 %v820, 2147483648
        %v822 = vsel %vm739, %v821, %v820
        %v823 = vsub.s32 4, %v799
        %v824 = vsel %vm739, %v823, %v799
        %v825 = vsel %vm738, %v424, %v822
        %v826 = vsel %vm738, 0, %v824
        %v827 = vcosq.f32.pop %v825
        %v828 = vsinq.f32.pop %v825
        %vm829 = vweird.f32 %v424
        %v830 = vadd.s32 %v826, 3
        %v831 = vand.u32 %v830, 3
        %vm832 = vcmp.lt.s32.totalorder %v831, 2
        %vm833 = vcmp.eq.s32.totalorder %v831, 0
        %v834 = vxor.u32 %v828, 2147483648
        %v835 = vsel %vm833, %v827, %v834
        %vm836 = vcmp.eq.s32.totalorder %v831, 2
        %v837 = vxor.u32 %v827, 2147483648
        %v838 = vsel %vm836, %v837, %v828
        %v839 = vsel %vm832, %v835, %v838
        %v840 = vsel %vm829, nan, %v839
        %v841 = vld [vmem:[%s5] sm:$0xff]
        %v842 = vld [vmem:[%s5 + $0x8] sm:$0xff]
        %vm843 = vcmask 64512
        %v845 = vsel %vm843, %v841, 0
        %v848 = vsel %vm843, %v842, 0
        %850 = vmatprep.subr.mxu0 %v632
        %851 = vmatpush1.msra.mxu0 %v528
        %852 = vmatprep.subr.mxu0 0.0
        %853 = vmatpush1.msra.mxu0 0.0
        %854 = vmatprep.subr.mxu0 0.0
        %855 = vmatpush1.msra.mxu0 0.0
        %856 = vmatprep.subr.mxu0 0.0
        %857 = vmatpush1.msra.mxu0 0.0
        %858 = vmatprep.subr.mxu0 0.0
        %859 = vmatpush1.msra.mxu0 0.0
        %860 = vmatprep.subr.mxu0 0.0
        %861 = vmatpush1.msra.mxu0 0.0
        %862 = vmatprep.subr.mxu0 0.0
        %863 = vmatpush1.msra.mxu0 0.0
        %864 = vmatprep.subr.mxu0 0.0
        %865 = vmatpush1.msra.mxu0 0.0
        %866 = vmatprep.subr.mxu0 0.0
        %867 = vmatpush1.msra.mxu0 0.0
        %868 = vmatprep.subr.mxu0 0.0
        %869 = vmatpush1.msra.mxu0 0.0
        %870 = vmatprep.subr.mxu0 0.0
        %871 = vmatpush1.msra.mxu0 0.0
        %872 = vmatprep.subr.mxu0 0.0
        %873 = vmatpush1.msra.mxu0 0.0
        %874 = vmatprep.subr.mxu0 0.0
        %875 = vmatpush1.msra.mxu0 0.0
        %876 = vmatprep.subr.mxu0 0.0
        %877 = vmatpush1.msra.mxu0 0.0
        %878 = vmatprep.subr.mxu0 0.0
        %879 = vmatpush1.msra.mxu0 0.0
        %880 = vmatprep.subr.mxu0 0.0
        %881 = vmatpush1.msra.mxu0 0.0
        %882 = vmatprep.subr.mxu0 0.0
        %883 = vmatpush1.msra.mxu0 0.0
        %884 = vmatprep.subr.mxu0 0.0
        %885 = vmatpush1.msra.mxu0 0.0
        %886 = vmatprep.subr.mxu0 0.0
        %887 = vmatpush1.msra.mxu0 0.0
        %888 = vmatprep.subr.mxu0 0.0
        %889 = vmatpush1.msra.mxu0 0.0
        %890 = vmatprep.subr.mxu0 0.0
        %891 = vmatpush1.msra.mxu0 0.0
        %892 = vmatprep.subr.mxu0 0.0
        %893 = vmatpush1.msra.mxu0 0.0
        %894 = vmatprep.subr.mxu0 0.0
        %895 = vmatpush1.msra.mxu0 0.0
        %896 = vmatprep.subr.mxu0 0.0
        %897 = vmatpush1.msra.mxu0 0.0
        %898 = vmatprep.subr.mxu0 0.0
        %899 = vmatpush1.msra.mxu0 0.0
        %900 = vmatprep.subr.mxu0 0.0
        %901 = vmatpush1.msra.mxu0 0.0
        %902 = vmatprep.subr.mxu0 0.0
        %903 = vmatpush1.msra.mxu0 0.0
        %904 = vmatprep.subr.mxu0 0.0
        %905 = vmatpush1.msra.mxu0 0.0
        %906 = vmatprep.subr.mxu0 0.0
        %907 = vmatpush1.msra.mxu0 0.0
        %908 = vmatprep.subr.mxu0 0.0
        %909 = vmatpush1.msra.mxu0 0.0
        %910 = vmatprep.subr.mxu0 0.0
        %911 = vmatpush1.msra.mxu0 0.0
        %912 = vmatprep.subr.mxu0 0.0
        %913 = vmatpush1.msra.mxu0 0.0
        %914 = vmatprep.mubr.f32.mxu0 0.0
        %915 = vmatmul.mubr.f32.gmra.mrb[0].mxu0 %v845
        %v916 = vpop.f32.mrb[0].mxu0
        %v917 = vadd.f32 0.0, %v916
        %v918 = vpop.f32.mrb[0].mxu0
        %v919 = vadd.f32 0.0, %v918
        %920 = vmatprep.mubr.f32.mxu0 0.0
        %921 = vmatmul.mubr.f32.gmra.mrb[0].mxu0 %v848
        %v922 = vpop.f32.mrb[0].mxu0
        %v923 = vadd.f32 0.0, %v922
        %v924 = vpop.f32.mrb[0].mxu0
        %v925 = vadd.f32 0.0, %v924
        %926 = vdwg.mxu0
        %927 = vmatprep.subr.mxu0 %v840
        %928 = vmatpush1.msra.mxu0 %v736
        %929 = vmatprep.subr.mxu0 0.0
        %930 = vmatpush1.msra.mxu0 0.0
        %931 = vmatprep.subr.mxu0 0.0
        %932 = vmatpush1.msra.mxu0 0.0
        %933 = vmatprep.subr.mxu0 0.0
        %934 = vmatpush1.msra.mxu0 0.0
        %935 = vmatprep.subr.mxu0 0.0
        %936 = vmatpush1.msra.mxu0 0.0
        %937 = vmatprep.subr.mxu0 0.0
        %938 = vmatpush1.msra.mxu0 0.0
        %939 = vmatprep.subr.mxu0 0.0
        %940 = vmatpush1.msra.mxu0 0.0
        %941 = vmatprep.subr.mxu0 0.0
        %942 = vmatpush1.msra.mxu0 0.0
        %943 = vmatprep.subr.mxu0 0.0
        %944 = vmatpush1.msra.mxu0 0.0
        %945 = vmatprep.subr.mxu0 0.0
        %946 = vmatpush1.msra.mxu0 0.0
        %947 = vmatprep.subr.mxu0 0.0
        %948 = vmatpush1.msra.mxu0 0.0
        %949 = vmatprep.subr.mxu0 0.0
        %950 = vmatpush1.msra.mxu0 0.0
        %951 = vmatprep.subr.mxu0 0.0
        %952 = vmatpush1.msra.mxu0 0.0
        %953 = vmatprep.subr.mxu0 0.0
        %954 = vmatpush1.msra.mxu0 0.0
        %955 = vmatprep.subr.mxu0 0.0
        %956 = vmatpush1.msra.mxu0 0.0
        %957 = vmatprep.subr.mxu0 0.0
        %958 = vmatpush1.msra.mxu0 0.0
        %959 = vmatprep.subr.mxu0 0.0
        %960 = vmatpush1.msra.mxu0 0.0
        %961 = vmatprep.subr.mxu0 0.0
        %962 = vmatpush1.msra.mxu0 0.0
        %963 = vmatprep.subr.mxu0 0.0
        %964 = vmatpush1.msra.mxu0 0.0
        %965 = vmatprep.subr.mxu0 0.0
        %966 = vmatpush1.msra.mxu0 0.0
        %967 = vmatprep.subr.mxu0 0.0
        %968 = vmatpush1.msra.mxu0 0.0
        %969 = vmatprep.subr.mxu0 0.0
        %970 = vmatpush1.msra.mxu0 0.0
        %971 = vmatprep.subr.mxu0 0.0
        %972 = vmatpush1.msra.mxu0 0.0
        %973 = vmatprep.subr.mxu0 0.0
        %974 = vmatpush1.msra.mxu0 0.0
        %975 = vmatprep.subr.mxu0 0.0
        %976 = vmatpush1.msra.mxu0 0.0
        %977 = vmatprep.subr.mxu0 0.0
        %978 = vmatpush1.msra.mxu0 0.0
        %979 = vmatprep.subr.mxu0 0.0
        %980 = vmatpush1.msra.mxu0 0.0
        %981 = vmatprep.subr.mxu0 0.0
        %982 = vmatpush1.msra.mxu0 0.0
        %983 = vmatprep.subr.mxu0 0.0
        %984 = vmatpush1.msra.mxu0 0.0
        %985 = vmatprep.subr.mxu0 0.0
        %986 = vmatpush1.msra.mxu0 0.0
        %987 = vmatprep.subr.mxu0 0.0
        %988 = vmatpush1.msra.mxu0 0.0
        %989 = vmatprep.subr.mxu0 0.0
        %990 = vmatpush1.msra.mxu0 0.0
        %991 = vmatprep.mubr.f32.mxu0 0.0
        %992 = vmatmul.mubr.f32.gmra.mrb[0].mxu0 %v845
        %v993 = vpop.f32.mrb[0].mxu0
        %v994 = vadd.f32 0.0, %v993
        %v995 = vpop.f32.mrb[0].mxu0
        %v996 = vadd.f32 0.0, %v995
        %997 = vmatprep.mubr.f32.mxu0 0.0
        %998 = vmatmul.mubr.f32.gmra.mrb[0].mxu0 %v848
        %v999 = vpop.f32.mrb[0].mxu0
        %v1000 = vadd.f32 0.0, %v999
        %v1001 = vpop.f32.mrb[0].mxu0
        %v1002 = vadd.f32 0.0, %v1001
        %1003 = vdwg.mxu0
        %v1004 = vld [vmem:[%s373] sm:$0xff]
        %v1005 = vld [vmem:[%s373 + $0x8] sm:$0xff]
        %v1006 = vld [vmem:[%s373 + $0x10] sm:$0xff]
        %v1007 = vld [vmem:[%s373 + $0x18] sm:$0xff]
        %v1008 = vld [vmem:[%s379] sm:$0xff]
        %1010 = vset.pattern.permute.xlu0 0
        %1011 = vperm.xlu0 %1010, %v1008
        %v1012 = vpop.permute.xlu0 %1011
        %v1014 = vadd.f32 %v917, %v1012
        %v1015 = vadd.f32 %v919, %v1012
        %v1016 = vadd.f32 %v994, %v1012
        %v1017 = vadd.f32 %v996, %v1012
        %v1018 = vmul.f32 %v1004, %v1014
        %v1019 = vmul.f32 %v1005, %v1015
        %v1020 = vmul.f32 %v1006, %v1016
        %v1021 = vmul.f32 %v1007, %v1017
        %v1022 = vld [vmem:[%s6] sm:$0xff]
        %v1024 = vsel %vm843, %v1022, 0
        %1026 = vmatprep.subr.mxu0 %v1019
        %1027 = vmatpush1.msra.mxu0 %v1018
        %1028 = vmatprep.subr.mxu0 0.0
        %1029 = vmatpush1.msra.mxu0 0.0
        %1030 = vmatprep.subr.mxu0 0.0
        %1031 = vmatpush1.msra.mxu0 0.0
        %1032 = vmatprep.subr.mxu0 0.0
        %1033 = vmatpush1.msra.mxu0 0.0
        %1034 = vmatprep.subr.mxu0 0.0
        %1035 = vmatpush1.msra.mxu0 0.0
        %1036 = vmatprep.subr.mxu0 0.0
        %1037 = vmatpush1.msra.mxu0 0.0
        %1038 = vmatprep.subr.mxu0 0.0
        %1039 = vmatpush1.msra.mxu0 0.0
        %1040 = vmatprep.subr.mxu0 0.0
        %1041 = vmatpush1.msra.mxu0 0.0
        %1042 = vmatprep.subr.mxu0 0.0
        %1043 = vmatpush1.msra.mxu0 0.0
        %1044 = vmatprep.subr.mxu0 0.0
        %1045 = vmatpush1.msra.mxu0 0.0
        %1046 = vmatprep.subr.mxu0 0.0
        %1047 = vmatpush1.msra.mxu0 0.0
        %1048 = vmatprep.subr.mxu0 0.0
        %1049 = vmatpush1.msra.mxu0 0.0
        %1050 = vmatprep.subr.mxu0 0.0
        %1051 = vmatpush1.msra.mxu0 0.0
        %1052 = vmatprep.subr.mxu0 0.0
        %1053 = vmatpush1.msra.mxu0 0.0
        %1054 = vmatprep.subr.mxu0 0.0
        %1055 = vmatpush1.msra.mxu0 0.0
        %1056 = vmatprep.subr.mxu0 0.0
        %1057 = vmatpush1.msra.mxu0 0.0
        %1058 = vmatprep.subr.mxu0 0.0
        %1059 = vmatpush1.msra.mxu0 0.0
        %1060 = vmatprep.subr.mxu0 0.0
        %1061 = vmatpush1.msra.mxu0 0.0
        %1062 = vmatprep.subr.mxu0 0.0
        %1063 = vmatpush1.msra.mxu0 0.0
        %1064 = vmatprep.subr.mxu0 0.0
        %1065 = vmatpush1.msra.mxu0 0.0
        %1066 = vmatprep.subr.mxu0 0.0
        %1067 = vmatpush1.msra.mxu0 0.0
        %1068 = vmatprep.subr.mxu0 0.0
        %1069 = vmatpush1.msra.mxu0 0.0
        %1070 = vmatprep.subr.mxu0 0.0
        %1071 = vmatpush1.msra.mxu0 0.0
        %1072 = vmatprep.subr.mxu0 0.0
        %1073 = vmatpush1.msra.mxu0 0.0
        %1074 = vmatprep.subr.mxu0 0.0
        %1075 = vmatpush1.msra.mxu0 0.0
        %1076 = vmatprep.subr.mxu0 0.0
        %1077 = vmatpush1.msra.mxu0 0.0
        %1078 = vmatprep.subr.mxu0 0.0
        %1079 = vmatpush1.msra.mxu0 0.0
        %1080 = vmatprep.subr.mxu0 0.0
        %1081 = vmatpush1.msra.mxu0 0.0
        %1082 = vmatprep.subr.mxu0 0.0
        %1083 = vmatpush1.msra.mxu0 0.0
        %1084 = vmatprep.subr.mxu0 0.0
        %1085 = vmatpush1.msra.mxu0 0.0
        %1086 = vmatprep.subr.mxu0 0.0
        %1087 = vmatpush1.msra.mxu0 0.0
        %1088 = vmatprep.subr.mxu0 0.0
        %1089 = vmatpush1.msra.mxu0 0.0
        %1090 = vmatprep.mubr.f32.mxu0 0.0
        %1091 = vmatmul.mubr.f32.gmra.mrb[0].mxu0 %v1024
        %v1092 = vpop.f32.mrb[0].mxu0
        %v1093 = vadd.f32 %v923, %v1092
        %v1094 = vpop.f32.mrb[0].mxu0
        %v1095 = vadd.f32 %v925, %v1094
        %1096 = vdwg.mxu0
        %1097 = vmatprep.subr.mxu0 %v1021
        %1098 = vmatpush1.msra.mxu0 %v1020
        %1099 = vmatprep.subr.mxu0 0.0
        %1100 = vmatpush1.msra.mxu0 0.0
        %1101 = vmatprep.subr.mxu0 0.0
        %1102 = vmatpush1.msra.mxu0 0.0
        %1103 = vmatprep.subr.mxu0 0.0
        %1104 = vmatpush1.msra.mxu0 0.0
        %1105 = vmatprep.subr.mxu0 0.0
        %1106 = vmatpush1.msra.mxu0 0.0
        %1107 = vmatprep.subr.mxu0 0.0
        %1108 = vmatpush1.msra.mxu0 0.0
        %1109 = vmatprep.subr.mxu0 0.0
        %1110 = vmatpush1.msra.mxu0 0.0
        %1111 = vmatprep.subr.mxu0 0.0
        %1112 = vmatpush1.msra.mxu0 0.0
        %1113 = vmatprep.subr.mxu0 0.0
        %1114 = vmatpush1.msra.mxu0 0.0
        %1115 = vmatprep.subr.mxu0 0.0
        %1116 = vmatpush1.msra.mxu0 0.0
        %1117 = vmatprep.subr.mxu0 0.0
        %1118 = vmatpush1.msra.mxu0 0.0
        %1119 = vmatprep.subr.mxu0 0.0
        %1120 = vmatpush1.msra.mxu0 0.0
        %1121 = vmatprep.subr.mxu0 0.0
        %1122 = vmatpush1.msra.mxu0 0.0
        %1123 = vmatprep.subr.mxu0 0.0
        %1124 = vmatpush1.msra.mxu0 0.0
        %1125 = vmatprep.subr.mxu0 0.0
        %1126 = vmatpush1.msra.mxu0 0.0
        %1127 = vmatprep.subr.mxu0 0.0
        %1128 = vmatpush1.msra.mxu0 0.0
        %1129 = vmatprep.subr.mxu0 0.0
        %1130 = vmatpush1.msra.mxu0 0.0
        %1131 = vmatprep.subr.mxu0 0.0
        %1132 = vmatpush1.msra.mxu0 0.0
        %1133 = vmatprep.subr.mxu0 0.0
        %1134 = vmatpush1.msra.mxu0 0.0
        %1135 = vmatprep.subr.mxu0 0.0
        %1136 = vmatpush1.msra.mxu0 0.0
        %1137 = vmatprep.subr.mxu0 0.0
        %1138 = vmatpush1.msra.mxu0 0.0
        %1139 = vmatprep.subr.mxu0 0.0
        %1140 = vmatpush1.msra.mxu0 0.0
        %1141 = vmatprep.subr.mxu0 0.0
        %1142 = vmatpush1.msra.mxu0 0.0
        %1143 = vmatprep.subr.mxu0 0.0
        %1144 = vmatpush1.msra.mxu0 0.0
        %1145 = vmatprep.subr.mxu0 0.0
        %1146 = vmatpush1.msra.mxu0 0.0
        %1147 = vmatprep.subr.mxu0 0.0
        %1148 = vmatpush1.msra.mxu0 0.0
        %1149 = vmatprep.subr.mxu0 0.0
        %1150 = vmatpush1.msra.mxu0 0.0
        %1151 = vmatprep.subr.mxu0 0.0
        %1152 = vmatpush1.msra.mxu0 0.0
        %1153 = vmatprep.subr.mxu0 0.0
        %1154 = vmatpush1.msra.mxu0 0.0
        %1155 = vmatprep.subr.mxu0 0.0
        %1156 = vmatpush1.msra.mxu0 0.0
        %1157 = vmatprep.subr.mxu0 0.0
        %1158 = vmatpush1.msra.mxu0 0.0
        %1159 = vmatprep.subr.mxu0 0.0
        %1160 = vmatpush1.msra.mxu0 0.0
        %1161 = vmatprep.mubr.f32.mxu0 0.0
        %1162 = vmatmul.mubr.f32.gmra.mrb[0].mxu0 %v1024
        %v1163 = vpop.f32.mrb[0].mxu0
        %v1164 = vadd.f32 %v1000, %v1163
        %v1165 = vpop.f32.mrb[0].mxu0
        %v1166 = vadd.f32 %v1002, %v1165
        %1167 = vdwg.mxu0
        %v1168 = vld [vmem:[%s383] sm:$0xff]
        %1170 = vset.pattern.permute.xlu0 0
        %1171 = vperm.xlu0 %1170, %v1168
        %v1172 = vpop.permute.xlu0 %1171
        %v1174 = vadd.f32 %v1093, %v1172
        %v1175 = vadd.f32 %v1095, %v1172
        %v1176 = vadd.f32 %v1164, %v1172
        %v1177 = vadd.f32 %v1166, %v1172
        %1178 = vst [vmem:[%s364] sm:$0xff] %v1174
        %1179 = vst [vmem:[%s364 + $0x8] sm:$0xff] %v1175
        %1180 = vst [vmem:[%s364 + $0x10] sm:$0xff] %v1176
        %1181 = vst [vmem:[%s364 + $0x18] sm:$0xff] %v1177
        %s1182 = sand.u32 %s217, 1
        %s1183 = scalar_lea.sflag [#allocation4], %s1182
        %s1184 = sand.u32 %s217, 1
        %s1185 = smul.addr %s1184, 32
        %s1186 = scalar_lea.vmem [#allocation5], %s1185
        // Predicated region
        $region53: #{tpu_custom_call.1} parent=47 // pred_check
          %p1187 = pneg %p227
        $region54: #{tpu_custom_call.1} parent=47 // pred_check_branch
          %1189 = sbr.rel (%p1187) target = $region56
        $region55: #{tpu_custom_call.1} parent=47 // pred_region
          %s1190 = smul.u32 4, %s29
          %s1192 = ssub.s32 512, 512
          %1193 = vsyncadd %s1183, %s1192
          %s1194 = smul.addr %s28, 4
          %s1195 = sadd.s32 %s1190, %s1194
          %s1196 = smul.addr %s1195, 128
          %s1197 = scalar_lea.hbm %s7, %s1196
          %s1199 = sshll.u32 %s1186, 4
          %s1200 = int_to_ptr.vmem [resolvable:$true] %s1199
          %1202 = dma.vmem_to_hbm [thread:$0]  %s1200, 512, %s1197, %s1183
        $region56: #{tpu_custom_call.1} parent=47 // pred_fallthru
          _
      $region48: #{tpu_custom_call.1} parent=5 // pred_fallthru
        _
      %p1203 = scmp.le.s32.totalorder 2, %s19
      // Predicated region
      $region57: #{tpu_custom_call.1} parent=5 // pred_check
        %p1204 = pneg %p1203
      $region58: #{tpu_custom_call.1} parent=5 // pred_check_branch
        %1206 = sbr.rel (%p1204) target = $region60
      $region59: #{tpu_custom_call.1} parent=5 // pred_region
        %s1207 = ssub.s32 %s19, 2
        // Predicated region
        $region61: #{tpu_custom_call.1} parent=59 // pred_check
          %p1208 = pneg %p233
        $region62: #{tpu_custom_call.1} parent=59 // pred_check_branch
          %1210 = sbr.rel (%p1208) target = $region64
        $region63: #{tpu_custom_call.1} parent=59 // pred_region
          %s1211 = sand.u32 %s218, 1
          %s1212 = scalar_lea.sflag [#allocation4], %s1211
          %s1213 = sand.u32 %s218, 1
          %s1214 = smul.addr %s1213, 32
          %s1215 = scalar_lea.vmem [#allocation5], %s1214
          %1216 = dma.done %s1212, 512
        $region64: #{tpu_custom_call.1} parent=59 // pred_fallthru
          _
      $region60: #{tpu_custom_call.1} parent=5 // pred_fallthru
        _
    $region6: #{tpu_custom_call.1} parent=1 // loop_footer
      %s23 = sadd.s32 1, %s19
    $region7: #{tpu_custom_call.1} parent=1 // loop_footer_branch
      %18 = sbr.rel target = $region3
    $region8: #{tpu_custom_call.1} parent=1 // loop_exit
      _
    %1217 = vsyncpa [#allocation3], 1
    %s1218 = scalar_lea.sflag [#allocation3], 1
    %1219 = vsyncpa %s1218, 1
    %1220 = vsyncpa [#allocation4], 1
    %s1221 = scalar_lea.sflag [#allocation4], 1
    %1222 = vsyncpa %s1221, 1

</llo_original>
